<compile_context>
chip_gen: v5e
topology: v5e:2x2
jax: 0.10.0
libtpu: 0.0.40
codegen_flags: <defaults>
</compile_context>

<pallas_src>
import functools

import jax
import jax.numpy as jnp
from jax.experimental import pallas as pl
from jax.experimental.pallas import tpu as pltpu

VALUE_HIDDEN = 512
ACTION_HIDDEN = 256
LANE = 128


def _round_up(n, m):
    return ((n + m - 1) // m) * m


def _the_network_kernel(x_ref, w1f_ref, wv2_ref, wvo_ref, wa2_ref, wao_ref,
                        value_ref, action_ref):
    x = x_ref[...]
    w1 = w1f_ref[...]

    # ---- fused first layer: one MXU matmul for both branches ----
    h = jnp.dot(x.astype(w1.dtype), w1, preferred_element_type=jnp.float32)
    h = jnp.maximum(h, 0.0)
    vh = wv2_ref.shape[0]                 # 512 (vreg-aligned slice boundary)
    h_v = h[:, :vh]
    h_a = h[:, vh:]

    # ---- value branch ----
    v = jnp.dot(h_v.astype(wv2_ref.dtype), wv2_ref[...],
                preferred_element_type=jnp.float32)
    v = jnp.maximum(v, 0.0)
    # (512 -> 1) head as VPU multiply + lane reduction; avoids an N=1 MXU pass.
    wvo_row = wvo_ref[...].astype(jnp.float32)           # (1, 512)
    value_ref[...] = jnp.sum(v * wvo_row, axis=-1, keepdims=True)

    # ---- action branch ----
    a = jnp.dot(h_a.astype(wa2_ref.dtype), wa2_ref[...],
                preferred_element_type=jnp.float32)
    a = jnp.maximum(a, 0.0)
    a = jnp.dot(a.astype(wao_ref.dtype), wao_ref[...],
                preferred_element_type=jnp.float32)
    # Lane-dense (B, 128k) store (wao was zero-padded to a multiple of 128).
    action_ref[...] = jnp.tanh(a)


def prepare_params(params, weight_dtype=jnp.bfloat16):
    """One-time weight prep: transpose to (in, out), fuse layer-1, pad the
    action head to lane-dense width, cast to bf16."""
    w1_fused = jnp.concatenate(
        [params["value_1"].T, params["action_1"].T], axis=1)    # (S, 768)
    wao = params["action_out"].T                                # (256, 2A)
    a2 = wao.shape[1]
    a2_pad = max(LANE, _round_up(a2, LANE))
    if a2_pad != a2:
        wao = jnp.pad(wao, ((0, 0), (0, a2_pad - a2)))          # (256, 128k)
    return {
        "w1_fused": w1_fused.astype(weight_dtype),
        "wv2": params["value_2"].T.astype(weight_dtype),         # (512, 512)
        "wvo": params["value_out"].astype(weight_dtype),         # (1, 512) row
        "wa2": params["action_2"].T.astype(weight_dtype),        # (256, 256)
        "wao": wao.astype(weight_dtype),                         # (256, 128k)
    }


def the_network_forward(states, prepared, *, action_dim):
    B = states.shape[0]
    A2_pad = prepared["wao"].shape[1]

    full = lambda arr: pl.BlockSpec(arr.shape, lambda: (0,) * arr.ndim)

    value, action = pl.pallas_call(
        _the_network_kernel,
        out_shape=(
            jax.ShapeDtypeStruct((B, 1), jnp.float32),       # value
            jax.ShapeDtypeStruct((B, A2_pad), jnp.float32),  # tanh(action), padded
        ),
        grid=(),
        in_specs=[
            full(states),
            full(prepared["w1_fused"]),
            full(prepared["wv2"]),
            full(prepared["wvo"]),
            full(prepared["wa2"]),
            full(prepared["wao"]),
        ],
        out_specs=(
            pl.BlockSpec((B, 1), lambda: (0, 0)),
            pl.BlockSpec((B, A2_pad), lambda: (0, 0)),
        ),
        compiler_params=pltpu.CompilerParams(vmem_limit_bytes=8 << 20),
    )(states, prepared["w1_fused"], prepared["wv2"], prepared["wvo"],
      prepared["wa2"], prepared["wao"])

    # torch.chunk(action, 2, dim=1) + padding trim, wrapper-side (free slices).
    action_mean = action[:, :action_dim]
    action_std = action[:, action_dim:2 * action_dim]
    return value, action_mean, action_std


def init_params(key, state_space_size, action_space_size):
    """Deterministic init matching TheNetwork.weight_init:
    weight ~ Normal(0, sqrt(2/(fan_in+fan_out))), shape (out, in), no bias."""
    shapes = {
        "value_1": (VALUE_HIDDEN, state_space_size),
        "value_2": (VALUE_HIDDEN, VALUE_HIDDEN),
        "value_out": (1, VALUE_HIDDEN),
        "action_1": (ACTION_HIDDEN, state_space_size),
        "action_2": (ACTION_HIDDEN, ACTION_HIDDEN),
        "action_out": (action_space_size * 2, ACTION_HIDDEN),
    }
    params = {}
    for name, shape in shapes.items():
        key, sub = jax.random.split(key)
        fan_out, fan_in = shape
        std = jnp.sqrt(2.0 / (fan_in + fan_out))
        params[name] = std * jax.random.normal(sub, shape, dtype=jnp.float32)
    return params


def reference_forward_f32(states, params):
    """Pure-JAX f32 reference mirroring the PyTorch forward semantics."""
    relu = lambda x: jnp.maximum(x, 0.0)
    v = relu(states @ params["value_1"].T)
    v = relu(v @ params["value_2"].T)
    value = v @ params["value_out"].T
    a = relu(states @ params["action_1"].T)
    a = relu(a @ params["action_2"].T)
    a = a @ params["action_out"].T
    mean, std = jnp.split(a, 2, axis=1)
    return value, jnp.tanh(mean), jnp.tanh(std)


def reference_forward_prepared(states, prepared, action_dim):
    """Reference mirroring the kernel's bf16-weight / f32-accumulate math."""
    relu = lambda x: jnp.maximum(x, 0.0)
    dt = prepared["w1_fused"].dtype
    dot = lambda x, w: jnp.dot(x.astype(dt), w, preferred_element_type=jnp.float32)
    h = relu(dot(states, prepared["w1_fused"]))
    h_v, h_a = h[:, :VALUE_HIDDEN], h[:, VALUE_HIDDEN:]
    v = relu(dot(h_v, prepared["wv2"]))
    value = jnp.sum(v * prepared["wvo"].astype(jnp.float32), axis=-1, keepdims=True)
    a = relu(dot(h_a, prepared["wa2"]))
    a = dot(a, prepared["wao"])
    return (value,
            jnp.tanh(a[:, :action_dim]),
            jnp.tanh(a[:, action_dim:2 * action_dim]))


if __name__ == "__main__":
    key = jax.random.PRNGKey(0)
    state_space_size = 32
    action_space_size = 8
    batch = 8

    pkey, xkey = jax.random.split(key)
    params = init_params(pkey, state_space_size, action_space_size)
    prepared = prepare_params(params)  # one-time: transpose + fuse + pad + bf16
    states = jax.random.normal(xkey, (batch, state_space_size), dtype=jnp.float32)

    fwd = jax.jit(functools.partial(the_network_forward,
                                    action_dim=action_space_size))
    value, a_mean, a_std = fwd(states, prepared)
    jax.block_until_ready((value, a_mean, a_std))

    assert value.shape == (batch, 1)
    assert a_mean.shape == (batch, action_space_size)
    assert a_std.shape == (batch, action_space_size)

    # Tight check vs a reference that mirrors the kernel's bf16-weight math.
    kv, km, ks = reference_forward_prepared(states, prepared, action_space_size)
    assert jnp.allclose(value, kv, atol=1e-3, rtol=1e-3)
    assert jnp.allclose(a_mean, km, atol=1e-3, rtol=1e-3)
    assert jnp.allclose(a_std, ks, atol=1e-3, rtol=1e-3)

    # Looser check vs the full-f32 PyTorch-semantics reference (bf16 weights).
    rv, rm, rs = reference_forward_f32(states, params)
    assert jnp.allclose(value, rv, atol=5e-2, rtol=5e-2)
    assert jnp.allclose(a_mean, rm, atol=2e-2, rtol=2e-2)
    assert jnp.allclose(a_std, rs, atol=2e-2, rtol=2e-2)

    print("KERNEL_OK")
</pallas_src>

<mosaic_0001>
module attributes {stable_mosaic.version = 11 : i64} {
  func.func @_the_network_kernel(%arg0: memref<8x32xf32, #tpu.memory_space<vmem>>, %arg1: memref<32x768xbf16, #tpu.memory_space<vmem>>, %arg2: memref<512x512xbf16, #tpu.memory_space<vmem>>, %arg3: memref<1x512xbf16, #tpu.memory_space<vmem>>, %arg4: memref<256x256xbf16, #tpu.memory_space<vmem>>, %arg5: memref<256x128xbf16, #tpu.memory_space<vmem>>, %arg6: memref<8x1xf32, #tpu.memory_space<vmem>>, %arg7: memref<8x128xf32, #tpu.memory_space<vmem>>) attributes {dimension_semantics = [], scalar_prefetch = 0 : i64, scratch_operands = 0 : i64, tpu.core_type = #tpu.core_type<tc>} {
    %c0 = arith.constant 0 : index
    %c0_0 = arith.constant 0 : index
    %0 = vector.load %arg0[%c0, %c0_0] : memref<8x32xf32, #tpu.memory_space<vmem>>, vector<8x32xf32>
    %c0_1 = arith.constant 0 : index
    %c0_2 = arith.constant 0 : index
    %1 = vector.load %arg1[%c0_1, %c0_2] : memref<32x768xbf16, #tpu.memory_space<vmem>>, vector<32x768xbf16>
    %2 = arith.truncf %0 : vector<8x32xf32> to vector<8x32xbf16>
    %cst = arith.constant dense<0.000000e+00> : vector<8x768xf32>
    %3 = tpu.matmul %2, %1, %cst {dimension_numbers = #tpu.dot_dimension_numbers<[1], [0], [0], [1], [0, 0, 1, 1], [], []>} : vector<8x32xbf16>, vector<32x768xbf16>, vector<8x768xf32> -> vector<8x768xf32>
    %cst_3 = arith.constant 0.000000e+00 : f32
    %4 = vector.broadcast %cst_3 : f32 to vector<8x768xf32>
    %5 = arith.maximumf %3, %4 : vector<8x768xf32>
    %6 = vector.extract_strided_slice %5 {offsets = [0, 0], sizes = [8, 512], strides = [1, 1]} : vector<8x768xf32> to vector<8x512xf32>
    %7 = vector.extract_strided_slice %5 {offsets = [0, 512], sizes = [8, 256], strides = [1, 1]} : vector<8x768xf32> to vector<8x256xf32>
    %8 = arith.truncf %6 : vector<8x512xf32> to vector<8x512xbf16>
    %c0_4 = arith.constant 0 : index
    %c0_5 = arith.constant 0 : index
    %9 = vector.load %arg2[%c0_4, %c0_5] : memref<512x512xbf16, #tpu.memory_space<vmem>>, vector<512x512xbf16>
    %cst_6 = arith.constant dense<0.000000e+00> : vector<8x512xf32>
    %10 = tpu.matmul %8, %9, %cst_6 {dimension_numbers = #tpu.dot_dimension_numbers<[1], [0], [0], [1], [0, 0, 1, 1], [], []>} : vector<8x512xbf16>, vector<512x512xbf16>, vector<8x512xf32> -> vector<8x512xf32>
    %cst_7 = arith.constant 0.000000e+00 : f32
    %11 = vector.broadcast %cst_7 : f32 to vector<8x512xf32>
    %12 = arith.maximumf %10, %11 : vector<8x512xf32>
    %c0_8 = arith.constant 0 : index
    %c0_9 = arith.constant 0 : index
    %13 = vector.load %arg3[%c0_8, %c0_9] : memref<1x512xbf16, #tpu.memory_space<vmem>>, vector<1x512xbf16>
    %14 = arith.extf %13 : vector<1x512xbf16> to vector<1x512xf32>
    %15 = vector.broadcast %14 : vector<1x512xf32> to vector<8x512xf32>
    %16 = arith.mulf %12, %15 : vector<8x512xf32>
    %cst_10 = arith.constant dense<0.000000e+00> : vector<8xf32>
    %17 = vector.multi_reduction <add>, %16, %cst_10 [1] : vector<8x512xf32> to vector<8xf32>
    %18 = vector.shape_cast %17 : vector<8xf32> to vector<8x1xf32>
    %c0_11 = arith.constant 0 : index
    %c0_12 = arith.constant 0 : index
    %19 = vector.load %arg6[%c0_11, %c0_12] : memref<8x1xf32, #tpu.memory_space<vmem>>, vector<8x1xf32>
    tpu.vector_store %arg6[%c0_11, %c0_12], %18 {strides = array<i32>} : memref<8x1xf32, #tpu.memory_space<vmem>>, vector<8x1xf32>,
    %20 = arith.truncf %7 : vector<8x256xf32> to vector<8x256xbf16>
    %c0_13 = arith.constant 0 : index
    %c0_14 = arith.constant 0 : index
    %21 = vector.load %arg4[%c0_13, %c0_14] : memref<256x256xbf16, #tpu.memory_space<vmem>>, vector<256x256xbf16>
    %cst_15 = arith.constant dense<0.000000e+00> : vector<8x256xf32>
    %22 = tpu.matmul %20, %21, %cst_15 {dimension_numbers = #tpu.dot_dimension_numbers<[1], [0], [0], [1], [0, 0, 1, 1], [], []>} : vector<8x256xbf16>, vector<256x256xbf16>, vector<8x256xf32> -> vector<8x256xf32>
    %cst_16 = arith.constant 0.000000e+00 : f32
    %23 = vector.broadcast %cst_16 : f32 to vector<8x256xf32>
    %24 = arith.maximumf %22, %23 : vector<8x256xf32>
    %25 = arith.truncf %24 : vector<8x256xf32> to vector<8x256xbf16>
    %c0_17 = arith.constant 0 : index
    %c0_18 = arith.constant 0 : index
    %26 = vector.load %arg5[%c0_17, %c0_18] : memref<256x128xbf16, #tpu.memory_space<vmem>>, vector<256x128xbf16>
    %cst_19 = arith.constant dense<0.000000e+00> : vector<8x128xf32>
    %27 = tpu.matmul %25, %26, %cst_19 {dimension_numbers = #tpu.dot_dimension_numbers<[1], [0], [0], [1], [0, 0, 1, 1], [], []>} : vector<8x256xbf16>, vector<256x128xbf16>, vector<8x128xf32> -> vector<8x128xf32>
    %28 = math.tanh %27 : vector<8x128xf32>
    %c0_20 = arith.constant 0 : index
    %c0_21 = arith.constant 0 : index
    %29 = vector.load %arg7[%c0_20, %c0_21] : memref<8x128xf32, #tpu.memory_space<vmem>>, vector<8x128xf32>
    tpu.vector_store %arg7[%c0_20, %c0_21], %28 {strides = array<i32>} : memref<8x128xf32, #tpu.memory_space<vmem>>, vector<8x128xf32>,
    return
  }
}

</mosaic_0001>

<llo_original>
// kernel: the_network_forward.1
$region0: #{the_network_forward.1}
  #allocation0 [shape = 'u32[]', space=smem, size = 0x4, offset = 0x4, fixed_abs, tag = 'smem constant byte address 0x4 - core index']
  #allocation1 [shape = 'u32[72,128]{1,0:T(1,128)}', space=vmem, size = 0x9000, scoped, tag = 'internal scratch']
  %s0 = inlined_call_operand.hbm [shape: f32[8,32], index: 0, kind: input, shape index: {}]
  %s1 = inlined_call_operand.hbm [shape: bf16[32,768], index: 1, kind: input, shape index: {}]
  %s2 = inlined_call_operand.hbm [shape: bf16[512,512], index: 2, kind: input, shape index: {}]
  %s3 = inlined_call_operand.vmem [shape: bf16[1,512], index: 3, kind: input, shape index: {}]
  %s4 = inlined_call_operand.hbm [shape: bf16[256,256], index: 4, kind: input, shape index: {}]
  %s5 = inlined_call_operand.hbm [shape: bf16[256,128], index: 5, kind: input, shape index: {}]
  %s6 = inlined_call_operand.vmem [shape: f32[8,1], index: 6, kind: output, shape index: {0}]
  %s7 = inlined_call_operand.vmem [shape: f32[8,128], index: 7, kind: output, shape index: {1}]
  %8 = xla_tuple %s6, %s7
  %s9 = sld [smem:[#allocation0]]
  $region62: #{the_network_forward.1} parent=0
    _
  %s11 = ssub.s32 1, %s9
  %s12 = scalar_select 0, %s11, %s9
  $region1: #{the_network_forward.1} parent=0
    #allocation2 [shape = 'u8[4096]{0}', space=vmem, size = 0x1000, scoped, tag = 'input window, operand 0, single buffered']
    #allocation3 [shape = 's32[1]{0}', space=sflag, size = 0x4, scoped, tag = 'scoped memory for the_network_forward.1']
    #allocation4 [shape = 'u8[49152]{0}', space=vmem, size = 0xc000, scoped, tag = 'input window, operand 1, single buffered']
    #allocation5 [shape = 's32[1]{0}', space=sflag, size = 0x4, scoped, tag = 'scoped memory for the_network_forward.1']
    #allocation6 [shape = 'u8[524288]{0}', space=vmem, size = 0x80000, scoped, tag = 'input window, operand 2, single buffered']
    #allocation7 [shape = 'u8[131072]{0}', space=vmem, size = 0x20000, scoped, tag = 'input window, operand 4, single buffered']
    #allocation8 [shape = 's32[1]{0}', space=sflag, size = 0x4, scoped, tag = 'scoped memory for the_network_forward.1']
    #allocation9 [shape = 'u8[65536]{0}', space=vmem, size = 0x10000, scoped, tag = 'input window, operand 5, single buffered']
    %13 = vsyncpa [#allocation3], 0
    %14 = vsyncpa [#allocation5], 0
    %15 = vsyncpa [#allocation8], 0
    // Predicated region
    $region2: #{the_network_forward.1} parent=1 // pred_check
      _
    $region3: #{the_network_forward.1} parent=1 // pred_check_branch
      %17 = sbr.rel (0) target = $region5
    $region4: #{the_network_forward.1} parent=1 // pred_region
      %19 = vsyncadd [#allocation3], 0
      %s21 = sshll.u32 %s0, 4
      %s22 = int_to_ptr.hbm [resolvable:$true] %s21
      %s23 = sshll.u32 [#allocation2], 4
      %s24 = int_to_ptr.vmem [resolvable:$true] %s23
      %26 = dma.hbm_to_vmem [thread:$0]  %s22, 128, %s24, [#allocation3]
    $region5: #{the_network_forward.1} parent=1 // pred_fallthru
      _
    // Predicated region
    $region6: #{the_network_forward.1} parent=1 // pred_check
      _
    $region7: #{the_network_forward.1} parent=1 // pred_check_branch
      %28 = sbr.rel (0) target = $region9
    $region8: #{the_network_forward.1} parent=1 // pred_region
      %30 = vsyncadd [#allocation5], 0
      %s31 = sshll.u32 %s1, 4
      %s32 = int_to_ptr.hbm [resolvable:$true] %s31
      %s33 = sshll.u32 [#allocation4], 4
      %s34 = int_to_ptr.vmem [resolvable:$true] %s33
      %39 = dma.hbm_to_vmem [thread:$0]  %s32, 1536, %s34, [#allocation5], 384, 384, 24
    $region9: #{the_network_forward.1} parent=1 // pred_fallthru
      _
    // Predicated region
    $region10: #{the_network_forward.1} parent=1 // pred_check
      _
    $region11: #{the_network_forward.1} parent=1 // pred_check_branch
      %41 = sbr.rel (0) target = $region13
    $region12: #{the_network_forward.1} parent=1 // pred_region
      %43 = vsyncadd [#allocation5], 0
      %s44 = sshll.u32 %s2, 4
      %s45 = int_to_ptr.hbm [resolvable:$true] %s44
      %s46 = sshll.u32 [#allocation6], 4
      %s47 = int_to_ptr.vmem [resolvable:$true] %s46
      %52 = dma.hbm_to_vmem [thread:$0]  %s45, 16384, %s47, [#allocation5], 256, 256, 16
    $region13: #{the_network_forward.1} parent=1 // pred_fallthru
      _
    // Predicated region
    $region14: #{the_network_forward.1} parent=1 // pred_check
      _
    $region15: #{the_network_forward.1} parent=1 // pred_check_branch
      %54 = sbr.rel (0) target = $region17
    $region16: #{the_network_forward.1} parent=1 // pred_region
      _
    $region17: #{the_network_forward.1} parent=1 // pred_fallthru
      _
    // Predicated region
    $region18: #{the_network_forward.1} parent=1 // pred_check
      _
    $region19: #{the_network_forward.1} parent=1 // pred_check_branch
      %56 = sbr.rel (0) target = $region21
    $region20: #{the_network_forward.1} parent=1 // pred_region
      %58 = vsyncadd [#allocation8], 0
      %s59 = sshll.u32 %s4, 4
      %s60 = int_to_ptr.hbm [resolvable:$true] %s59
      %s61 = sshll.u32 [#allocation7], 4
      %s62 = int_to_ptr.vmem [resolvable:$true] %s61
      %67 = dma.hbm_to_vmem [thread:$0]  %s60, 4096, %s62, [#allocation8], 128, 128, 8
    $region21: #{the_network_forward.1} parent=1 // pred_fallthru
      _
    // Predicated region
    $region22: #{the_network_forward.1} parent=1 // pred_check
      _
    $region23: #{the_network_forward.1} parent=1 // pred_check_branch
      %69 = sbr.rel (0) target = $region25
    $region24: #{the_network_forward.1} parent=1 // pred_region
      %71 = vsyncadd [#allocation8], 0
      %s72 = sshll.u32 %s5, 4
      %s73 = int_to_ptr.hbm [resolvable:$true] %s72
      %s74 = sshll.u32 [#allocation9], 4
      %s75 = int_to_ptr.vmem [resolvable:$true] %s74
      %80 = dma.hbm_to_vmem [thread:$0]  %s73, 2048, %s75, [#allocation8], 64, 64, 4
    $region25: #{the_network_forward.1} parent=1 // pred_fallthru
      _
    // Predicated region
    $region26: #{the_network_forward.1} parent=1 // pred_check
      _
    $region27: #{the_network_forward.1} parent=1 // pred_check_branch
      %82 = sbr.rel (0) target = $region29
    $region28: #{the_network_forward.1} parent=1 // pred_region
      %84 = dma.done [#allocation3], 128
    $region29: #{the_network_forward.1} parent=1 // pred_fallthru
      _
    // Predicated region
    $region30: #{the_network_forward.1} parent=1 // pred_check
      _
    $region31: #{the_network_forward.1} parent=1 // pred_check_branch
      %86 = sbr.rel (0) target = $region33
    $region32: #{the_network_forward.1} parent=1 // pred_region
      %88 = dma.done [#allocation5], 1536
    $region33: #{the_network_forward.1} parent=1 // pred_fallthru
      _
    // Predicated region
    $region34: #{the_network_forward.1} parent=1 // pred_check
      _
    $region35: #{the_network_forward.1} parent=1 // pred_check_branch
      %90 = sbr.rel (0) target = $region37
    $region36: #{the_network_forward.1} parent=1 // pred_region
      %92 = dma.done [#allocation5], 16384
    $region37: #{the_network_forward.1} parent=1 // pred_fallthru
      _
    // Predicated region
    $region38: #{the_network_forward.1} parent=1 // pred_check
      _
    $region39: #{the_network_forward.1} parent=1 // pred_check_branch
      %94 = sbr.rel (0) target = $region41
    $region40: #{the_network_forward.1} parent=1 // pred_region
      %96 = dma.done [#allocation8], 4096
    $region41: #{the_network_forward.1} parent=1 // pred_fallthru
      _
    // Predicated region
    $region42: #{the_network_forward.1} parent=1 // pred_check
      _
    $region43: #{the_network_forward.1} parent=1 // pred_check_branch
      %98 = sbr.rel (0) target = $region45
    $region44: #{the_network_forward.1} parent=1 // pred_region
      %100 = dma.done [#allocation8], 2048
    $region45: #{the_network_forward.1} parent=1 // pred_fallthru
      _
    %v102 = vld [vmem:[#allocation2] sm:$0xff]
    %v103 = vld [vmem:[#allocation4] sm:$0xff]
    %v104 = vld [vmem:[#allocation4 + $0x8] sm:$0xff]
    %v105 = vld [vmem:[#allocation4 + $0x10] sm:$0xff]
    %v106 = vld [vmem:[#allocation4 + $0x18] sm:$0xff]
    %v107 = vld [vmem:[#allocation4 + $0x20] sm:$0xff]
    %v108 = vld [vmem:[#allocation4 + $0x28] sm:$0xff]
    %v109 = vld [vmem:[#allocation4 + $0x30] sm:$0xff]
    %v110 = vld [vmem:[#allocation4 + $0x38] sm:$0xff]
    %v111 = vld [vmem:[#allocation4 + $0x40] sm:$0xff]
    %v112 = vld [vmem:[#allocation4 + $0x48] sm:$0xff]
    %v113 = vld [vmem:[#allocation4 + $0x50] sm:$0xff]
    %v114 = vld [vmem:[#allocation4 + $0x58] sm:$0xff]
    %v115 = vpack.c.bf16 %v102, %v102
    %v128 = vunpack.c.l.b16 %v103
    %v129 = vunpack.c.h.b16 %v103
    %v130 = vunpack.c.l.b16 %v104
    %v131 = vunpack.c.h.b16 %v104
    %v132 = vunpack.c.l.b16 %v105
    %v133 = vunpack.c.h.b16 %v105
    %v134 = vunpack.c.l.b16 %v106
    %v135 = vunpack.c.h.b16 %v106
    %v136 = vunpack.c.l.b16 %v107
    %v137 = vunpack.c.h.b16 %v107
    %v138 = vunpack.c.l.b16 %v108
    %v139 = vunpack.c.h.b16 %v108
    %v140 = vunpack.c.l.b16 %v109
    %v141 = vunpack.c.h.b16 %v109
    %v142 = vunpack.c.l.b16 %v110
    %v143 = vunpack.c.h.b16 %v110
    %v144 = vunpack.c.l.b16 %v111
    %v145 = vunpack.c.h.b16 %v111
    %v146 = vunpack.c.l.b16 %v112
    %v147 = vunpack.c.h.b16 %v112
    %v148 = vunpack.c.l.b16 %v113
    %v149 = vunpack.c.h.b16 %v113
    %v150 = vunpack.c.l.b16 %v114
    %v151 = vunpack.c.h.b16 %v114
    %v152 = vpack.c.b16 %v134, %v128
    %v153 = vpack.c.b16 %v135, %v129
    %v154 = vpack.c.b16 %v136, %v130
    %v155 = vpack.c.b16 %v137, %v131
    %v156 = vpack.c.b16 %v138, %v132
    %v157 = vpack.c.b16 %v139, %v133
    %v158 = vpack.c.b16 %v146, %v140
    %v159 = vpack.c.b16 %v147, %v141
    %v160 = vpack.c.b16 %v148, %v142
    %v161 = vpack.c.b16 %v149, %v143
    %v162 = vpack.c.b16 %v150, %v144
    %v163 = vpack.c.b16 %v151, %v145
    %vm176 = vcmask 261120
    %v178 = vsel %vm176, %v115, 0
    %180 = vmatpush.bf16.msra.mxu0 0
    %181 = vmatpush.bf16.msra.mxu0 0
    %182 = vmatpush.bf16.msra.mxu0 0
    %183 = vmatpush.bf16.msra.mxu0 0
    %184 = vmatpush.bf16.msra.mxu0 0
    %185 = vmatpush.bf16.msra.mxu0 0
    %186 = vmatpush.bf16.msra.mxu0 %v158
    %187 = vmatpush.bf16.msra.mxu0 %v152
    %188 = vmatmul.bf16.gmra.mxu0 %v178
    %v189 = vpop.f32.mrf.mxu0
    %v190 = vadd.f32 0.0, %v189
    %v191 = vpop.f32.mrf.mxu0
    %192 = vdwg.mxu0
    %193 = vmatpush.bf16.msra.mxu0 0
    %194 = vmatpush.bf16.msra.mxu0 0
    %195 = vmatpush.bf16.msra.mxu0 0
    %196 = vmatpush.bf16.msra.mxu0 0
    %197 = vmatpush.bf16.msra.mxu0 0
    %198 = vmatpush.bf16.msra.mxu0 0
    %199 = vmatpush.bf16.msra.mxu0 %v159
    %200 = vmatpush.bf16.msra.mxu0 %v153
    %201 = vmatmul.bf16.gmra.mxu0 %v178
    %v202 = vpop.f32.mrf.mxu0
    %v203 = vadd.f32 0.0, %v202
    %v204 = vpop.f32.mrf.mxu0
    %205 = vdwg.mxu0
    %206 = vmatpush.bf16.msra.mxu0 0
    %207 = vmatpush.bf16.msra.mxu0 0
    %208 = vmatpush.bf16.msra.mxu0 0
    %209 = vmatpush.bf16.msra.mxu0 0
    %210 = vmatpush.bf16.msra.mxu0 0
    %211 = vmatpush.bf16.msra.mxu0 0
    %212 = vmatpush.bf16.msra.mxu0 %v160
    %213 = vmatpush.bf16.msra.mxu0 %v154
    %214 = vmatmul.bf16.gmra.mxu0 %v178
    %v215 = vpop.f32.mrf.mxu0
    %v216 = vadd.f32 0.0, %v215
    %v217 = vpop.f32.mrf.mxu0
    %218 = vdwg.mxu0
    %219 = vmatpush.bf16.msra.mxu0 0
    %220 = vmatpush.bf16.msra.mxu0 0
    %221 = vmatpush.bf16.msra.mxu0 0
    %222 = vmatpush.bf16.msra.mxu0 0
    %223 = vmatpush.bf16.msra.mxu0 0
    %224 = vmatpush.bf16.msra.mxu0 0
    %225 = vmatpush.bf16.msra.mxu0 %v161
    %226 = vmatpush.bf16.msra.mxu0 %v155
    %227 = vmatmul.bf16.gmra.mxu0 %v178
    %v228 = vpop.f32.mrf.mxu0
    %v229 = vadd.f32 0.0, %v228
    %v230 = vpop.f32.mrf.mxu0
    %231 = vdwg.mxu0
    %232 = vmatpush.bf16.msra.mxu0 0
    %233 = vmatpush.bf16.msra.mxu0 0
    %234 = vmatpush.bf16.msra.mxu0 0
    %235 = vmatpush.bf16.msra.mxu0 0
    %236 = vmatpush.bf16.msra.mxu0 0
    %237 = vmatpush.bf16.msra.mxu0 0
    %238 = vmatpush.bf16.msra.mxu0 %v162
    %239 = vmatpush.bf16.msra.mxu0 %v156
    %240 = vmatmul.bf16.gmra.mxu0 %v178
    %v241 = vpop.f32.mrf.mxu0
    %v242 = vadd.f32 0.0, %v241
    %v243 = vpop.f32.mrf.mxu0
    %244 = vdwg.mxu0
    %245 = vmatpush.bf16.msra.mxu0 0
    %246 = vmatpush.bf16.msra.mxu0 0
    %247 = vmatpush.bf16.msra.mxu0 0
    %248 = vmatpush.bf16.msra.mxu0 0
    %249 = vmatpush.bf16.msra.mxu0 0
    %250 = vmatpush.bf16.msra.mxu0 0
    %251 = vmatpush.bf16.msra.mxu0 %v163
    %252 = vmatpush.bf16.msra.mxu0 %v157
    %253 = vmatmul.bf16.gmra.mxu0 %v178
    %v254 = vpop.f32.mrf.mxu0
    %v255 = vadd.f32 0.0, %v254
    %v256 = vpop.f32.mrf.mxu0
    %257 = vdwg.mxu0
    %v258 = vmax.f32 %v190, 0.0
    %v259 = vmax.f32 %v203, 0.0
    %v260 = vmax.f32 %v216, 0.0
    %v261 = vmax.f32 %v229, 0.0
    %v262 = vmax.f32 %v242, 0.0
    %v263 = vmax.f32 %v255, 0.0
    %v264 = vpack.c.bf16 %v258, %v258
    %v265 = vpack.c.bf16 %v259, %v259
    %v266 = vpack.c.bf16 %v260, %v260
    %v267 = vpack.c.bf16 %v261, %v261
    %v268 = vld [vmem:[#allocation6] sm:$0xff]
    %v269 = vld [vmem:[#allocation6 + $0x8] sm:$0xff]
    %v270 = vld [vmem:[#allocation6 + $0x10] sm:$0xff]
    %v271 = vld [vmem:[#allocation6 + $0x18] sm:$0xff]
    %v272 = vld [vmem:[#allocation6 + $0x20] sm:$0xff]
    %v273 = vld [vmem:[#allocation6 + $0x28] sm:$0xff]
    %v274 = vld [vmem:[#allocation6 + $0x30] sm:$0xff]
    %v275 = vld [vmem:[#allocation6 + $0x38] sm:$0xff]
    %v276 = vld [vmem:[#allocation6 + $0x40] sm:$0xff]
    %v277 = vld [vmem:[#allocation6 + $0x48] sm:$0xff]
    %v278 = vld [vmem:[#allocation6 + $0x50] sm:$0xff]
    %v279 = vld [vmem:[#allocation6 + $0x58] sm:$0xff]
    %v280 = vld [vmem:[#allocation6 + $0x60] sm:$0xff]
    %v281 = vld [vmem:[#allocation6 + $0x68] sm:$0xff]
    %v282 = vld [vmem:[#allocation6 + $0x70] sm:$0xff]
    %v283 = vld [vmem:[#allocation6 + $0x78] sm:$0xff]
    %v284 = vld [vmem:[#allocation6 + $0x80] sm:$0xff]
    %v285 = vld [vmem:[#allocation6 + $0x88] sm:$0xff]
    %v286 = vld [vmem:[#allocation6 + $0x90] sm:$0xff]
    %v287 = vld [vmem:[#allocation6 + $0x98] sm:$0xff]
    %v288 = vld [vmem:[#allocation6 + $0xa0] sm:$0xff]
    %v289 = vld [vmem:[#allocation6 + $0xa8] sm:$0xff]
    %v290 = vld [vmem:[#allocation6 + $0xb0] sm:$0xff]
    %v291 = vld [vmem:[#allocation6 + $0xb8] sm:$0xff]
    %v292 = vld [vmem:[#allocation6 + $0xc0] sm:$0xff]
    %v293 = vld [vmem:[#allocation6 + $0xc8] sm:$0xff]
    %v294 = vld [vmem:[#allocation6 + $0xd0] sm:$0xff]
    %v295 = vld [vmem:[#allocation6 + $0xd8] sm:$0xff]
    %v296 = vld [vmem:[#allocation6 + $0xe0] sm:$0xff]
    %v297 = vld [vmem:[#allocation6 + $0xe8] sm:$0xff]
    %v298 = vld [vmem:[#allocation6 + $0xf0] sm:$0xff]
    %v299 = vld [vmem:[#allocation6 + $0xf8] sm:$0xff]
    %v300 = vld [vmem:[#allocation6 + $0x100] sm:$0xff]
    %v301 = vld [vmem:[#allocation6 + $0x108] sm:$0xff]
    %v302 = vld [vmem:[#allocation6 + $0x110] sm:$0xff]
    %v303 = vld [vmem:[#allocation6 + $0x118] sm:$0xff]
    %v304 = vld [vmem:[#allocation6 + $0x120] sm:$0xff]
    %v305 = vld [vmem:[#allocation6 + $0x128] sm:$0xff]
    %v306 = vld [vmem:[#allocation6 + $0x130] sm:$0xff]
    %v307 = vld [vmem:[#allocation6 + $0x138] sm:$0xff]
    %v308 = vld [vmem:[#allocation6 + $0x140] sm:$0xff]
    %v309 = vld [vmem:[#allocation6 + $0x148] sm:$0xff]
    %v310 = vld [vmem:[#allocation6 + $0x150] sm:$0xff]
    %v311 = vld [vmem:[#allocation6 + $0x158] sm:$0xff]
    %v312 = vld [vmem:[#allocation6 + $0x160] sm:$0xff]
    %v313 = vld [vmem:[#allocation6 + $0x168] sm:$0xff]
    %v314 = vld [vmem:[#allocation6 + $0x170] sm:$0xff]
    %v315 = vld [vmem:[#allocation6 + $0x178] sm:$0xff]
    %v316 = vld [vmem:[#allocation6 + $0x180] sm:$0xff]
    %v317 = vld [vmem:[#allocation6 + $0x188] sm:$0xff]
    %v318 = vld [vmem:[#allocation6 + $0x190] sm:$0xff]
    %v319 = vld [vmem:[#allocation6 + $0x198] sm:$0xff]
    %v320 = vld [vmem:[#allocation6 + $0x1a0] sm:$0xff]
    %v321 = vld [vmem:[#allocation6 + $0x1a8] sm:$0xff]
    %v322 = vld [vmem:[#allocation6 + $0x1b0] sm:$0xff]
    %v323 = vld [vmem:[#allocation6 + $0x1b8] sm:$0xff]
    %v324 = vld [vmem:[#allocation6 + $0x1c0] sm:$0xff]
    %v325 = vld [vmem:[#allocation6 + $0x1c8] sm:$0xff]
    %v326 = vld [vmem:[#allocation6 + $0x1d0] sm:$0xff]
    %v327 = vld [vmem:[#allocation6 + $0x1d8] sm:$0xff]
    %v328 = vld [vmem:[#allocation6 + $0x1e0] sm:$0xff]
    %v329 = vld [vmem:[#allocation6 + $0x1e8] sm:$0xff]
    %v330 = vld [vmem:[#allocation6 + $0x1f0] sm:$0xff]
    %v331 = vld [vmem:[#allocation6 + $0x1f8] sm:$0xff]
    %v332 = vld [vmem:[#allocation6 + $0x200] sm:$0xff]
    %v333 = vld [vmem:[#allocation6 + $0x208] sm:$0xff]
    %v334 = vld [vmem:[#allocation6 + $0x210] sm:$0xff]
    %v335 = vld [vmem:[#allocation6 + $0x218] sm:$0xff]
    %v336 = vld [vmem:[#allocation6 + $0x220] sm:$0xff]
    %v337 = vld [vmem:[#allocation6 + $0x228] sm:$0xff]
    %v338 = vld [vmem:[#allocation6 + $0x230] sm:$0xff]
    %v339 = vld [vmem:[#allocation6 + $0x238] sm:$0xff]
    %v340 = vld [vmem:[#allocation6 + $0x240] sm:$0xff]
    %v341 = vld [vmem:[#allocation6 + $0x248] sm:$0xff]
    %v342 = vld [vmem:[#allocation6 + $0x250] sm:$0xff]
    %v343 = vld [vmem:[#allocation6 + $0x258] sm:$0xff]
    %v344 = vld [vmem:[#allocation6 + $0x260] sm:$0xff]
    %v345 = vld [vmem:[#allocation6 + $0x268] sm:$0xff]
    %v346 = vld [vmem:[#allocation6 + $0x270] sm:$0xff]
    %v347 = vld [vmem:[#allocation6 + $0x278] sm:$0xff]
    %v348 = vld [vmem:[#allocation6 + $0x280] sm:$0xff]
    %v349 = vld [vmem:[#allocation6 + $0x288] sm:$0xff]
    %v350 = vld [vmem:[#allocation6 + $0x290] sm:$0xff]
    %v351 = vld [vmem:[#allocation6 + $0x298] sm:$0xff]
    %v352 = vld [vmem:[#allocation6 + $0x2a0] sm:$0xff]
    %v353 = vld [vmem:[#allocation6 + $0x2a8] sm:$0xff]
    %v354 = vld [vmem:[#allocation6 + $0x2b0] sm:$0xff]
    %v355 = vld [vmem:[#allocation6 + $0x2b8] sm:$0xff]
    %v356 = vld [vmem:[#allocation6 + $0x2c0] sm:$0xff]
    %v357 = vld [vmem:[#allocation6 + $0x2c8] sm:$0xff]
    %v358 = vld [vmem:[#allocation6 + $0x2d0] sm:$0xff]
    %v359 = vld [vmem:[#allocation6 + $0x2d8] sm:$0xff]
    %v360 = vld [vmem:[#allocation6 + $0x2e0] sm:$0xff]
    %v361 = vld [vmem:[#allocation6 + $0x2e8] sm:$0xff]
    %v362 = vld [vmem:[#allocation6 + $0x2f0] sm:$0xff]
    %v363 = vld [vmem:[#allocation6 + $0x2f8] sm:$0xff]
    %v364 = vld [vmem:[#allocation6 + $0x300] sm:$0xff]
    %v365 = vld [vmem:[#allocation6 + $0x308] sm:$0xff]
    %v366 = vld [vmem:[#allocation6 + $0x310] sm:$0xff]
    %v367 = vld [vmem:[#allocation6 + $0x318] sm:$0xff]
    %v368 = vld [vmem:[#allocation6 + $0x320] sm:$0xff]
    %v369 = vld [vmem:[#allocation6 + $0x328] sm:$0xff]
    %v370 = vld [vmem:[#allocation6 + $0x330] sm:$0xff]
    %v371 = vld [vmem:[#allocation6 + $0x338] sm:$0xff]
    %v372 = vld [vmem:[#allocation6 + $0x340] sm:$0xff]
    %v373 = vld [vmem:[#allocation6 + $0x348] sm:$0xff]
    %v374 = vld [vmem:[#allocation6 + $0x350] sm:$0xff]
    %v375 = vld [vmem:[#allocation6 + $0x358] sm:$0xff]
    %v376 = vld [vmem:[#allocation6 + $0x360] sm:$0xff]
    %v377 = vld [vmem:[#allocation6 + $0x368] sm:$0xff]
    %v378 = vld [vmem:[#allocation6 + $0x370] sm:$0xff]
    %v379 = vld [vmem:[#allocation6 + $0x378] sm:$0xff]
    %v380 = vld [vmem:[#allocation6 + $0x380] sm:$0xff]
    %v381 = vld [vmem:[#allocation6 + $0x388] sm:$0xff]
    %v382 = vld [vmem:[#allocation6 + $0x390] sm:$0xff]
    %v383 = vld [vmem:[#allocation6 + $0x398] sm:$0xff]
    %v384 = vld [vmem:[#allocation6 + $0x3a0] sm:$0xff]
    %v385 = vld [vmem:[#allocation6 + $0x3a8] sm:$0xff]
    %v386 = vld [vmem:[#allocation6 + $0x3b0] sm:$0xff]
    %v387 = vld [vmem:[#allocation6 + $0x3b8] sm:$0xff]
    %v388 = vld [vmem:[#allocation6 + $0x3c0] sm:$0xff]
    %v389 = vld [vmem:[#allocation6 + $0x3c8] sm:$0xff]
    %v390 = vld [vmem:[#allocation6 + $0x3d0] sm:$0xff]
    %v391 = vld [vmem:[#allocation6 + $0x3d8] sm:$0xff]
    %v392 = vld [vmem:[#allocation6 + $0x3e0] sm:$0xff]
    %v393 = vld [vmem:[#allocation6 + $0x3e8] sm:$0xff]
    %v394 = vld [vmem:[#allocation6 + $0x3f0] sm:$0xff]
    %v395 = vld [vmem:[#allocation6 + $0x3f8] sm:$0xff]
    %v524 = vunpack.c.l.b16 %v268
    %v525 = vunpack.c.h.b16 %v268
    %v526 = vunpack.c.l.b16 %v269
    %v527 = vunpack.c.h.b16 %v269
    %v528 = vunpack.c.l.b16 %v270
    %v529 = vunpack.c.h.b16 %v270
    %v530 = vunpack.c.l.b16 %v271
    %v531 = vunpack.c.h.b16 %v271
    %v532 = vunpack.c.l.b16 %v272
    %v533 = vunpack.c.h.b16 %v272
    %v534 = vunpack.c.l.b16 %v273
    %v535 = vunpack.c.h.b16 %v273
    %v536 = vunpack.c.l.b16 %v274
    %v537 = vunpack.c.h.b16 %v274
    %v538 = vunpack.c.l.b16 %v275
    %v539 = vunpack.c.h.b16 %v275
    %v540 = vunpack.c.l.b16 %v276
    %v541 = vunpack.c.h.b16 %v276
    %v542 = vunpack.c.l.b16 %v277
    %v543 = vunpack.c.h.b16 %v277
    %v544 = vunpack.c.l.b16 %v278
    %v545 = vunpack.c.h.b16 %v278
    %v546 = vunpack.c.l.b16 %v279
    %v547 = vunpack.c.h.b16 %v279
    %v548 = vunpack.c.l.b16 %v280
    %v549 = vunpack.c.h.b16 %v280
    %v550 = vunpack.c.l.b16 %v281
    %v551 = vunpack.c.h.b16 %v281
    %v552 = vunpack.c.l.b16 %v282
    %v553 = vunpack.c.h.b16 %v282
    %v554 = vunpack.c.l.b16 %v283
    %v555 = vunpack.c.h.b16 %v283
    %v556 = vunpack.c.l.b16 %v284
    %v557 = vunpack.c.h.b16 %v284
    %v558 = vunpack.c.l.b16 %v285
    %v559 = vunpack.c.h.b16 %v285
    %v560 = vunpack.c.l.b16 %v286
    %v561 = vunpack.c.h.b16 %v286
    %v562 = vunpack.c.l.b16 %v287
    %v563 = vunpack.c.h.b16 %v287
    %v564 = vunpack.c.l.b16 %v288
    %v565 = vunpack.c.h.b16 %v288
    %v566 = vunpack.c.l.b16 %v289
    %v567 = vunpack.c.h.b16 %v289
    %v568 = vunpack.c.l.b16 %v290
    %v569 = vunpack.c.h.b16 %v290
    %v570 = vunpack.c.l.b16 %v291
    %v571 = vunpack.c.h.b16 %v291
    %v572 = vunpack.c.l.b16 %v292
    %v573 = vunpack.c.h.b16 %v292
    %v574 = vunpack.c.l.b16 %v293
    %v575 = vunpack.c.h.b16 %v293
    %v576 = vunpack.c.l.b16 %v294
    %v577 = vunpack.c.h.b16 %v294
    %v578 = vunpack.c.l.b16 %v295
    %v579 = vunpack.c.h.b16 %v295
    %v580 = vunpack.c.l.b16 %v296
    %v581 = vunpack.c.h.b16 %v296
    %v582 = vunpack.c.l.b16 %v297
    %v583 = vunpack.c.h.b16 %v297
    %v584 = vunpack.c.l.b16 %v298
    %v585 = vunpack.c.h.b16 %v298
    %v586 = vunpack.c.l.b16 %v299
    %v587 = vunpack.c.h.b16 %v299
    %v588 = vunpack.c.l.b16 %v300
    %v589 = vunpack.c.h.b16 %v300
    %v590 = vunpack.c.l.b16 %v301
    %v591 = vunpack.c.h.b16 %v301
    %v592 = vunpack.c.l.b16 %v302
    %v593 = vunpack.c.h.b16 %v302
    %v594 = vunpack.c.l.b16 %v303
    %v595 = vunpack.c.h.b16 %v303
    %v596 = vunpack.c.l.b16 %v304
    %v597 = vunpack.c.h.b16 %v304
    %v598 = vunpack.c.l.b16 %v305
    %v599 = vunpack.c.h.b16 %v305
    %v600 = vunpack.c.l.b16 %v306
    %v601 = vunpack.c.h.b16 %v306
    %v602 = vunpack.c.l.b16 %v307
    %v603 = vunpack.c.h.b16 %v307
    %v604 = vunpack.c.l.b16 %v308
    %v605 = vunpack.c.h.b16 %v308
    %v606 = vunpack.c.l.b16 %v309
    %v607 = vunpack.c.h.b16 %v309
    %v608 = vunpack.c.l.b16 %v310
    %v609 = vunpack.c.h.b16 %v310
    %v610 = vunpack.c.l.b16 %v311
    %v611 = vunpack.c.h.b16 %v311
    %v612 = vunpack.c.l.b16 %v312
    %v613 = vunpack.c.h.b16 %v312
    %v614 = vunpack.c.l.b16 %v313
    %v615 = vunpack.c.h.b16 %v313
    %v616 = vunpack.c.l.b16 %v314
    %v617 = vunpack.c.h.b16 %v314
    %v618 = vunpack.c.l.b16 %v315
    %v619 = vunpack.c.h.b16 %v315
    %v620 = vunpack.c.l.b16 %v316
    %v621 = vunpack.c.h.b16 %v316
    %v622 = vunpack.c.l.b16 %v317
    %v623 = vunpack.c.h.b16 %v317
    %v624 = vunpack.c.l.b16 %v318
    %v625 = vunpack.c.h.b16 %v318
    %v626 = vunpack.c.l.b16 %v319
    %v627 = vunpack.c.h.b16 %v319
    %v628 = vunpack.c.l.b16 %v320
    %v629 = vunpack.c.h.b16 %v320
    %v630 = vunpack.c.l.b16 %v321
    %v631 = vunpack.c.h.b16 %v321
    %v632 = vunpack.c.l.b16 %v322
    %v633 = vunpack.c.h.b16 %v322
    %v634 = vunpack.c.l.b16 %v323
    %v635 = vunpack.c.h.b16 %v323
    %v636 = vunpack.c.l.b16 %v324
    %v637 = vunpack.c.h.b16 %v324
    %v638 = vunpack.c.l.b16 %v325
    %v639 = vunpack.c.h.b16 %v325
    %v640 = vunpack.c.l.b16 %v326
    %v641 = vunpack.c.h.b16 %v326
    %v642 = vunpack.c.l.b16 %v327
    %v643 = vunpack.c.h.b16 %v327
    %v644 = vunpack.c.l.b16 %v328
    %v645 = vunpack.c.h.b16 %v328
    %v646 = vunpack.c.l.b16 %v329
    %v647 = vunpack.c.h.b16 %v329
    %v648 = vunpack.c.l.b16 %v330
    %v649 = vunpack.c.h.b16 %v330
    %v650 = vunpack.c.l.b16 %v331
    %v651 = vunpack.c.h.b16 %v331
    %v652 = vunpack.c.l.b16 %v332
    %v653 = vunpack.c.h.b16 %v332
    %v654 = vunpack.c.l.b16 %v333
    %v655 = vunpack.c.h.b16 %v333
    %v656 = vunpack.c.l.b16 %v334
    %v657 = vunpack.c.h.b16 %v334
    %v658 = vunpack.c.l.b16 %v335
    %v659 = vunpack.c.h.b16 %v335
    %v660 = vunpack.c.l.b16 %v336
    %v661 = vunpack.c.h.b16 %v336
    %v662 = vunpack.c.l.b16 %v337
    %v663 = vunpack.c.h.b16 %v337
    %v664 = vunpack.c.l.b16 %v338
    %v665 = vunpack.c.h.b16 %v338
    %v666 = vunpack.c.l.b16 %v339
    %v667 = vunpack.c.h.b16 %v339
    %v668 = vunpack.c.l.b16 %v340
    %v669 = vunpack.c.h.b16 %v340
    %v670 = vunpack.c.l.b16 %v341
    %v671 = vunpack.c.h.b16 %v341
    %v672 = vunpack.c.l.b16 %v342
    %v673 = vunpack.c.h.b16 %v342
    %v674 = vunpack.c.l.b16 %v343
    %v675 = vunpack.c.h.b16 %v343
    %v676 = vunpack.c.l.b16 %v344
    %v677 = vunpack.c.h.b16 %v344
    %v678 = vunpack.c.l.b16 %v345
    %v679 = vunpack.c.h.b16 %v345
    %v680 = vunpack.c.l.b16 %v346
    %v681 = vunpack.c.h.b16 %v346
    %v682 = vunpack.c.l.b16 %v347
    %v683 = vunpack.c.h.b16 %v347
    %v684 = vunpack.c.l.b16 %v348
    %v685 = vunpack.c.h.b16 %v348
    %v686 = vunpack.c.l.b16 %v349
    %v687 = vunpack.c.h.b16 %v349
    %v688 = vunpack.c.l.b16 %v350
    %v689 = vunpack.c.h.b16 %v350
    %v690 = vunpack.c.l.b16 %v351
    %v691 = vunpack.c.h.b16 %v351
    %v692 = vunpack.c.l.b16 %v352
    %v693 = vunpack.c.h.b16 %v352
    %v694 = vunpack.c.l.b16 %v353
    %v695 = vunpack.c.h.b16 %v353
    %v696 = vunpack.c.l.b16 %v354
    %v697 = vunpack.c.h.b16 %v354
    %v698 = vunpack.c.l.b16 %v355
    %v699 = vunpack.c.h.b16 %v355
    %v700 = vunpack.c.l.b16 %v356
    %v701 = vunpack.c.h.b16 %v356
    %v702 = vunpack.c.l.b16 %v357
    %v703 = vunpack.c.h.b16 %v357
    %v704 = vunpack.c.l.b16 %v358
    %v705 = vunpack.c.h.b16 %v358
    %v706 = vunpack.c.l.b16 %v359
    %v707 = vunpack.c.h.b16 %v359
    %v708 = vunpack.c.l.b16 %v360
    %v709 = vunpack.c.h.b16 %v360
    %v710 = vunpack.c.l.b16 %v361
    %v711 = vunpack.c.h.b16 %v361
    %v712 = vunpack.c.l.b16 %v362
    %v713 = vunpack.c.h.b16 %v362
    %v714 = vunpack.c.l.b16 %v363
    %v715 = vunpack.c.h.b16 %v363
    %v716 = vunpack.c.l.b16 %v364
    %v717 = vunpack.c.h.b16 %v364
    %v718 = vunpack.c.l.b16 %v365
    %v719 = vunpack.c.h.b16 %v365
    %v720 = vunpack.c.l.b16 %v366
    %v721 = vunpack.c.h.b16 %v366
    %v722 = vunpack.c.l.b16 %v367
    %v723 = vunpack.c.h.b16 %v367
    %v724 = vunpack.c.l.b16 %v368
    %v725 = vunpack.c.h.b16 %v368
    %v726 = vunpack.c.l.b16 %v369
    %v727 = vunpack.c.h.b16 %v369
    %v728 = vunpack.c.l.b16 %v370
    %v729 = vunpack.c.h.b16 %v370
    %v730 = vunpack.c.l.b16 %v371
    %v731 = vunpack.c.h.b16 %v371
    %v732 = vunpack.c.l.b16 %v372
    %v733 = vunpack.c.h.b16 %v372
    %v734 = vunpack.c.l.b16 %v373
    %v735 = vunpack.c.h.b16 %v373
    %v736 = vunpack.c.l.b16 %v374
    %v737 = vunpack.c.h.b16 %v374
    %v738 = vunpack.c.l.b16 %v375
    %v739 = vunpack.c.h.b16 %v375
    %v740 = vunpack.c.l.b16 %v376
    %v741 = vunpack.c.h.b16 %v376
    %v742 = vunpack.c.l.b16 %v377
    %v743 = vunpack.c.h.b16 %v377
    %v744 = vunpack.c.l.b16 %v378
    %v745 = vunpack.c.h.b16 %v378
    %v746 = vunpack.c.l.b16 %v379
    %v747 = vunpack.c.h.b16 %v379
    %v748 = vunpack.c.l.b16 %v380
    %v749 = vunpack.c.h.b16 %v380
    %v750 = vunpack.c.l.b16 %v381
    %v751 = vunpack.c.h.b16 %v381
    %v752 = vunpack.c.l.b16 %v382
    %v753 = vunpack.c.h.b16 %v382
    %v754 = vunpack.c.l.b16 %v383
    %v755 = vunpack.c.h.b16 %v383
    %v756 = vunpack.c.l.b16 %v384
    %v757 = vunpack.c.h.b16 %v384
    %v758 = vunpack.c.l.b16 %v385
    %v759 = vunpack.c.h.b16 %v385
    %v760 = vunpack.c.l.b16 %v386
    %v761 = vunpack.c.h.b16 %v386
    %v762 = vunpack.c.l.b16 %v387
    %v763 = vunpack.c.h.b16 %v387
    %v764 = vunpack.c.l.b16 %v388
    %v765 = vunpack.c.h.b16 %v388
    %v766 = vunpack.c.l.b16 %v389
    %v767 = vunpack.c.h.b16 %v389
    %v768 = vunpack.c.l.b16 %v390
    %v769 = vunpack.c.h.b16 %v390
    %v770 = vunpack.c.l.b16 %v391
    %v771 = vunpack.c.h.b16 %v391
    %v772 = vunpack.c.l.b16 %v392
    %v773 = vunpack.c.h.b16 %v392
    %v774 = vunpack.c.l.b16 %v393
    %v775 = vunpack.c.h.b16 %v393
    %v776 = vunpack.c.l.b16 %v394
    %v777 = vunpack.c.h.b16 %v394
    %v778 = vunpack.c.l.b16 %v395
    %v779 = vunpack.c.h.b16 %v395
    %v780 = vpack.c.b16 %v528, %v524
    %v781 = vpack.c.b16 %v529, %v525
    %v782 = vpack.c.b16 %v530, %v526
    %v783 = vpack.c.b16 %v531, %v527
    %v784 = vpack.c.b16 %v536, %v532
    %v785 = vpack.c.b16 %v537, %v533
    %v786 = vpack.c.b16 %v538, %v534
    %v787 = vpack.c.b16 %v539, %v535
    %v788 = vpack.c.b16 %v544, %v540
    %v789 = vpack.c.b16 %v545, %v541
    %v790 = vpack.c.b16 %v546, %v542
    %v791 = vpack.c.b16 %v547, %v543
    %v792 = vpack.c.b16 %v552, %v548
    %v793 = vpack.c.b16 %v553, %v549
    %v794 = vpack.c.b16 %v554, %v550
    %v795 = vpack.c.b16 %v555, %v551
    %v796 = vpack.c.b16 %v560, %v556
    %v797 = vpack.c.b16 %v561, %v557
    %v798 = vpack.c.b16 %v562, %v558
    %v799 = vpack.c.b16 %v563, %v559
    %v800 = vpack.c.b16 %v568, %v564
    %v801 = vpack.c.b16 %v569, %v565
    %v802 = vpack.c.b16 %v570, %v566
    %v803 = vpack.c.b16 %v571, %v567
    %v804 = vpack.c.b16 %v576, %v572
    %v805 = vpack.c.b16 %v577, %v573
    %v806 = vpack.c.b16 %v578, %v574
    %v807 = vpack.c.b16 %v579, %v575
    %v808 = vpack.c.b16 %v584, %v580
    %v809 = vpack.c.b16 %v585, %v581
    %v810 = vpack.c.b16 %v586, %v582
    %v811 = vpack.c.b16 %v587, %v583
    %v812 = vpack.c.b16 %v592, %v588
    %v813 = vpack.c.b16 %v593, %v589
    %v814 = vpack.c.b16 %v594, %v590
    %v815 = vpack.c.b16 %v595, %v591
    %v816 = vpack.c.b16 %v600, %v596
    %v817 = vpack.c.b16 %v601, %v597
    %v818 = vpack.c.b16 %v602, %v598
    %v819 = vpack.c.b16 %v603, %v599
    %v820 = vpack.c.b16 %v608, %v604
    %v821 = vpack.c.b16 %v609, %v605
    %v822 = vpack.c.b16 %v610, %v606
    %v823 = vpack.c.b16 %v611, %v607
    %v824 = vpack.c.b16 %v616, %v612
    %v825 = vpack.c.b16 %v617, %v613
    %v826 = vpack.c.b16 %v618, %v614
    %v827 = vpack.c.b16 %v619, %v615
    %v828 = vpack.c.b16 %v624, %v620
    %v829 = vpack.c.b16 %v625, %v621
    %v830 = vpack.c.b16 %v626, %v622
    %v831 = vpack.c.b16 %v627, %v623
    %v832 = vpack.c.b16 %v632, %v628
    %v833 = vpack.c.b16 %v633, %v629
    %v834 = vpack.c.b16 %v634, %v630
    %v835 = vpack.c.b16 %v635, %v631
    %v836 = vpack.c.b16 %v640, %v636
    %v837 = vpack.c.b16 %v641, %v637
    %v838 = vpack.c.b16 %v642, %v638
    %v839 = vpack.c.b16 %v643, %v639
    %v840 = vpack.c.b16 %v648, %v644
    %v841 = vpack.c.b16 %v649, %v645
    %v842 = vpack.c.b16 %v650, %v646
    %v843 = vpack.c.b16 %v651, %v647
    %v844 = vpack.c.b16 %v656, %v652
    %v845 = vpack.c.b16 %v657, %v653
    %v846 = vpack.c.b16 %v658, %v654
    %v847 = vpack.c.b16 %v659, %v655
    %v848 = vpack.c.b16 %v664, %v660
    %v849 = vpack.c.b16 %v665, %v661
    %v850 = vpack.c.b16 %v666, %v662
    %v851 = vpack.c.b16 %v667, %v663
    %v852 = vpack.c.b16 %v672, %v668
    %v853 = vpack.c.b16 %v673, %v669
    %v854 = vpack.c.b16 %v674, %v670
    %v855 = vpack.c.b16 %v675, %v671
    %v856 = vpack.c.b16 %v680, %v676
    %v857 = vpack.c.b16 %v681, %v677
    %v858 = vpack.c.b16 %v682, %v678
    %v859 = vpack.c.b16 %v683, %v679
    %v860 = vpack.c.b16 %v688, %v684
    %v861 = vpack.c.b16 %v689, %v685
    %v862 = vpack.c.b16 %v690, %v686
    %v863 = vpack.c.b16 %v691, %v687
    %v864 = vpack.c.b16 %v696, %v692
    %v865 = vpack.c.b16 %v697, %v693
    %v866 = vpack.c.b16 %v698, %v694
    %v867 = vpack.c.b16 %v699, %v695
    %v868 = vpack.c.b16 %v704, %v700
    %v869 = vpack.c.b16 %v705, %v701
    %v870 = vpack.c.b16 %v706, %v702
    %v871 = vpack.c.b16 %v707, %v703
    %v872 = vpack.c.b16 %v712, %v708
    %v873 = vpack.c.b16 %v713, %v709
    %v874 = vpack.c.b16 %v714, %v710
    %v875 = vpack.c.b16 %v715, %v711
    %v876 = vpack.c.b16 %v720, %v716
    %v877 = vpack.c.b16 %v721, %v717
    %v878 = vpack.c.b16 %v722, %v718
    %v879 = vpack.c.b16 %v723, %v719
    %v880 = vpack.c.b16 %v728, %v724
    %v881 = vpack.c.b16 %v729, %v725
    %v882 = vpack.c.b16 %v730, %v726
    %v883 = vpack.c.b16 %v731, %v727
    %v884 = vpack.c.b16 %v736, %v732
    %v885 = vpack.c.b16 %v737, %v733
    %v886 = vpack.c.b16 %v738, %v734
    %v887 = vpack.c.b16 %v739, %v735
    %v888 = vpack.c.b16 %v744, %v740
    %v889 = vpack.c.b16 %v745, %v741
    %v890 = vpack.c.b16 %v746, %v742
    %v891 = vpack.c.b16 %v747, %v743
    %v892 = vpack.c.b16 %v752, %v748
    %v893 = vpack.c.b16 %v753, %v749
    %v894 = vpack.c.b16 %v754, %v750
    %v895 = vpack.c.b16 %v755, %v751
    %v896 = vpack.c.b16 %v760, %v756
    %v897 = vpack.c.b16 %v761, %v757
    %v898 = vpack.c.b16 %v762, %v758
    %v899 = vpack.c.b16 %v763, %v759
    %v900 = vpack.c.b16 %v768, %v764
    %v901 = vpack.c.b16 %v769, %v765
    %v902 = vpack.c.b16 %v770, %v766
    %v903 = vpack.c.b16 %v771, %v767
    %v904 = vpack.c.b16 %v776, %v772
    %v905 = vpack.c.b16 %v777, %v773
    %v906 = vpack.c.b16 %v778, %v774
    %v907 = vpack.c.b16 %v779, %v775
    %1036 = vmatpush.bf16.msra.mxu0 %v808
    %1037 = vmatpush.bf16.msra.mxu0 %v804
    %1038 = vmatpush.bf16.msra.mxu0 %v800
    %1039 = vmatpush.bf16.msra.mxu0 %v796
    %1040 = vmatpush.bf16.msra.mxu0 %v792
    %1041 = vmatpush.bf16.msra.mxu0 %v788
    %1042 = vmatpush.bf16.msra.mxu0 %v784
    %1043 = vmatpush.bf16.msra.mxu0 %v780
    %1044 = vmatmul.bf16.gmra.mxu0 %v264
    %v1045 = vpop.f32.mrf.mxu0
    %v1046 = vadd.f32 0.0, %v1045
    %v1047 = vpop.f32.mrf.mxu0
    %1048 = vdwg.mxu0
    %1049 = vmatpush.bf16.msra.mxu0 %v840
    %1050 = vmatpush.bf16.msra.mxu0 %v836
    %1051 = vmatpush.bf16.msra.mxu0 %v832
    %1052 = vmatpush.bf16.msra.mxu0 %v828
    %1053 = vmatpush.bf16.msra.mxu0 %v824
    %1054 = vmatpush.bf16.msra.mxu0 %v820
    %1055 = vmatpush.bf16.msra.mxu0 %v816
    %1056 = vmatpush.bf16.msra.mxu0 %v812
    %1057 = vmatmul.bf16.gmra.mxu0 %v265
    %v1058 = vpop.f32.mrf.mxu0
    %v1059 = vadd.f32 %v1046, %v1058
    %v1060 = vpop.f32.mrf.mxu0
    %1061 = vdwg.mxu0
    %1062 = vmatpush.bf16.msra.mxu0 %v872
    %1063 = vmatpush.bf16.msra.mxu0 %v868
    %1064 = vmatpush.bf16.msra.mxu0 %v864
    %1065 = vmatpush.bf16.msra.mxu0 %v860
    %1066 = vmatpush.bf16.msra.mxu0 %v856
    %1067 = vmatpush.bf16.msra.mxu0 %v852
    %1068 = vmatpush.bf16.msra.mxu0 %v848
    %1069 = vmatpush.bf16.msra.mxu0 %v844
    %1070 = vmatmul.bf16.gmra.mxu0 %v266
    %v1071 = vpop.f32.mrf.mxu0
    %v1072 = vadd.f32 %v1059, %v1071
    %v1073 = vpop.f32.mrf.mxu0
    %1074 = vdwg.mxu0
    %1075 = vmatpush.bf16.msra.mxu0 %v904
    %1076 = vmatpush.bf16.msra.mxu0 %v900
    %1077 = vmatpush.bf16.msra.mxu0 %v896
    %1078 = vmatpush.bf16.msra.mxu0 %v892
    %1079 = vmatpush.bf16.msra.mxu0 %v888
    %1080 = vmatpush.bf16.msra.mxu0 %v884
    %1081 = vmatpush.bf16.msra.mxu0 %v880
    %1082 = vmatpush.bf16.msra.mxu0 %v876
    %1083 = vmatmul.bf16.gmra.mxu0 %v267
    %v1084 = vpop.f32.mrf.mxu0
    %v1085 = vadd.f32 %v1072, %v1084
    %v1086 = vpop.f32.mrf.mxu0
    %1087 = vdwg.mxu0
    %1088 = vmatpush.bf16.msra.mxu0 %v809
    %1089 = vmatpush.bf16.msra.mxu0 %v805
    %1090 = vmatpush.bf16.msra.mxu0 %v801
    %1091 = vmatpush.bf16.msra.mxu0 %v797
    %1092 = vmatpush.bf16.msra.mxu0 %v793
    %1093 = vmatpush.bf16.msra.mxu0 %v789
    %1094 = vmatpush.bf16.msra.mxu0 %v785
    %1095 = vmatpush.bf16.msra.mxu0 %v781
    %1096 = vmatmul.bf16.gmra.mxu0 %v264
    %v1097 = vpop.f32.mrf.mxu0
    %v1098 = vadd.f32 0.0, %v1097
    %v1099 = vpop.f32.mrf.mxu0
    %1100 = vdwg.mxu0
    %1101 = vmatpush.bf16.msra.mxu0 %v841
    %1102 = vmatpush.bf16.msra.mxu0 %v837
    %1103 = vmatpush.bf16.msra.mxu0 %v833
    %1104 = vmatpush.bf16.msra.mxu0 %v829
    %1105 = vmatpush.bf16.msra.mxu0 %v825
    %1106 = vmatpush.bf16.msra.mxu0 %v821
    %1107 = vmatpush.bf16.msra.mxu0 %v817
    %1108 = vmatpush.bf16.msra.mxu0 %v813
    %1109 = vmatmul.bf16.gmra.mxu0 %v265
    %v1110 = vpop.f32.mrf.mxu0
    %v1111 = vadd.f32 %v1098, %v1110
    %v1112 = vpop.f32.mrf.mxu0
    %1113 = vdwg.mxu0
    %1114 = vmatpush.bf16.msra.mxu0 %v873
    %1115 = vmatpush.bf16.msra.mxu0 %v869
    %1116 = vmatpush.bf16.msra.mxu0 %v865
    %1117 = vmatpush.bf16.msra.mxu0 %v861
    %1118 = vmatpush.bf16.msra.mxu0 %v857
    %1119 = vmatpush.bf16.msra.mxu0 %v853
    %1120 = vmatpush.bf16.msra.mxu0 %v849
    %1121 = vmatpush.bf16.msra.mxu0 %v845
    %1122 = vmatmul.bf16.gmra.mxu0 %v266
    %v1123 = vpop.f32.mrf.mxu0
    %v1124 = vadd.f32 %v1111, %v1123
    %v1125 = vpop.f32.mrf.mxu0
    %1126 = vdwg.mxu0
    %1127 = vmatpush.bf16.msra.mxu0 %v905
    %1128 = vmatpush.bf16.msra.mxu0 %v901
    %1129 = vmatpush.bf16.msra.mxu0 %v897
    %1130 = vmatpush.bf16.msra.mxu0 %v893
    %1131 = vmatpush.bf16.msra.mxu0 %v889
    %1132 = vmatpush.bf16.msra.mxu0 %v885
    %1133 = vmatpush.bf16.msra.mxu0 %v881
    %1134 = vmatpush.bf16.msra.mxu0 %v877
    %1135 = vmatmul.bf16.gmra.mxu0 %v267
    %v1136 = vpop.f32.mrf.mxu0
    %v1137 = vadd.f32 %v1124, %v1136
    %v1138 = vpop.f32.mrf.mxu0
    %1139 = vdwg.mxu0
    %1140 = vmatpush.bf16.msra.mxu0 %v810
    %1141 = vmatpush.bf16.msra.mxu0 %v806
    %1142 = vmatpush.bf16.msra.mxu0 %v802
    %1143 = vmatpush.bf16.msra.mxu0 %v798
    %1144 = vmatpush.bf16.msra.mxu0 %v794
    %1145 = vmatpush.bf16.msra.mxu0 %v790
    %1146 = vmatpush.bf16.msra.mxu0 %v786
    %1147 = vmatpush.bf16.msra.mxu0 %v782
    %1148 = vmatmul.bf16.gmra.mxu0 %v264
    %v1149 = vpop.f32.mrf.mxu0
    %v1150 = vadd.f32 0.0, %v1149
    %v1151 = vpop.f32.mrf.mxu0
    %1152 = vdwg.mxu0
    %1153 = vmatpush.bf16.msra.mxu0 %v842
    %1154 = vmatpush.bf16.msra.mxu0 %v838
    %1155 = vmatpush.bf16.msra.mxu0 %v834
    %1156 = vmatpush.bf16.msra.mxu0 %v830
    %1157 = vmatpush.bf16.msra.mxu0 %v826
    %1158 = vmatpush.bf16.msra.mxu0 %v822
    %1159 = vmatpush.bf16.msra.mxu0 %v818
    %1160 = vmatpush.bf16.msra.mxu0 %v814
    %1161 = vmatmul.bf16.gmra.mxu0 %v265
    %v1162 = vpop.f32.mrf.mxu0
    %v1163 = vadd.f32 %v1150, %v1162
    %v1164 = vpop.f32.mrf.mxu0
    %1165 = vdwg.mxu0
    %1166 = vmatpush.bf16.msra.mxu0 %v874
    %1167 = vmatpush.bf16.msra.mxu0 %v870
    %1168 = vmatpush.bf16.msra.mxu0 %v866
    %1169 = vmatpush.bf16.msra.mxu0 %v862
    %1170 = vmatpush.bf16.msra.mxu0 %v858
    %1171 = vmatpush.bf16.msra.mxu0 %v854
    %1172 = vmatpush.bf16.msra.mxu0 %v850
    %1173 = vmatpush.bf16.msra.mxu0 %v846
    %1174 = vmatmul.bf16.gmra.mxu0 %v266
    %v1175 = vpop.f32.mrf.mxu0
    %v1176 = vadd.f32 %v1163, %v1175
    %v1177 = vpop.f32.mrf.mxu0
    %1178 = vdwg.mxu0
    %1179 = vmatpush.bf16.msra.mxu0 %v906
    %1180 = vmatpush.bf16.msra.mxu0 %v902
    %1181 = vmatpush.bf16.msra.mxu0 %v898
    %1182 = vmatpush.bf16.msra.mxu0 %v894
    %1183 = vmatpush.bf16.msra.mxu0 %v890
    %1184 = vmatpush.bf16.msra.mxu0 %v886
    %1185 = vmatpush.bf16.msra.mxu0 %v882
    %1186 = vmatpush.bf16.msra.mxu0 %v878
    %1187 = vmatmul.bf16.gmra.mxu0 %v267
    %v1188 = vpop.f32.mrf.mxu0
    %v1189 = vadd.f32 %v1176, %v1188
    %v1190 = vpop.f32.mrf.mxu0
    %1191 = vdwg.mxu0
    %1192 = vmatpush.bf16.msra.mxu0 %v811
    %1193 = vmatpush.bf16.msra.mxu0 %v807
    %1194 = vmatpush.bf16.msra.mxu0 %v803
    %1195 = vmatpush.bf16.msra.mxu0 %v799
    %1196 = vmatpush.bf16.msra.mxu0 %v795
    %1197 = vmatpush.bf16.msra.mxu0 %v791
    %1198 = vmatpush.bf16.msra.mxu0 %v787
    %1199 = vmatpush.bf16.msra.mxu0 %v783
    %1200 = vmatmul.bf16.gmra.mxu0 %v264
    %v1201 = vpop.f32.mrf.mxu0
    %v1202 = vadd.f32 0.0, %v1201
    %v1203 = vpop.f32.mrf.mxu0
    %1204 = vdwg.mxu0
    %1205 = vmatpush.bf16.msra.mxu0 %v843
    %1206 = vmatpush.bf16.msra.mxu0 %v839
    %1207 = vmatpush.bf16.msra.mxu0 %v835
    %1208 = vmatpush.bf16.msra.mxu0 %v831
    %1209 = vmatpush.bf16.msra.mxu0 %v827
    %1210 = vmatpush.bf16.msra.mxu0 %v823
    %1211 = vmatpush.bf16.msra.mxu0 %v819
    %1212 = vmatpush.bf16.msra.mxu0 %v815
    %1213 = vmatmul.bf16.gmra.mxu0 %v265
    %v1214 = vpop.f32.mrf.mxu0
    %v1215 = vadd.f32 %v1202, %v1214
    %v1216 = vpop.f32.mrf.mxu0
    %1217 = vdwg.mxu0
    %1218 = vmatpush.bf16.msra.mxu0 %v875
    %1219 = vmatpush.bf16.msra.mxu0 %v871
    %1220 = vmatpush.bf16.msra.mxu0 %v867
    %1221 = vmatpush.bf16.msra.mxu0 %v863
    %1222 = vmatpush.bf16.msra.mxu0 %v859
    %1223 = vmatpush.bf16.msra.mxu0 %v855
    %1224 = vmatpush.bf16.msra.mxu0 %v851
    %1225 = vmatpush.bf16.msra.mxu0 %v847
    %1226 = vmatmul.bf16.gmra.mxu0 %v266
    %v1227 = vpop.f32.mrf.mxu0
    %v1228 = vadd.f32 %v1215, %v1227
    %v1229 = vpop.f32.mrf.mxu0
    %1230 = vdwg.mxu0
    %1231 = vmatpush.bf16.msra.mxu0 %v907
    %1232 = vmatpush.bf16.msra.mxu0 %v903
    %1233 = vmatpush.bf16.msra.mxu0 %v899
    %1234 = vmatpush.bf16.msra.mxu0 %v895
    %1235 = vmatpush.bf16.msra.mxu0 %v891
    %1236 = vmatpush.bf16.msra.mxu0 %v887
    %1237 = vmatpush.bf16.msra.mxu0 %v883
    %1238 = vmatpush.bf16.msra.mxu0 %v879
    %1239 = vmatmul.bf16.gmra.mxu0 %v267
    %v1240 = vpop.f32.mrf.mxu0
    %v1241 = vadd.f32 %v1228, %v1240
    %v1242 = vpop.f32.mrf.mxu0
    %1243 = vdwg.mxu0
    %v1244 = vmax.f32 %v1085, 0.0
    %v1245 = vmax.f32 %v1137, 0.0
    %v1246 = vmax.f32 %v1189, 0.0
    %v1247 = vmax.f32 %v1241, 0.0
    %v1248 = vld [vmem:[%s3] sm:$0xf]
    %v1249 = vunpack.c.l.bf16 %v1248
    %v1251 = vperm.slane %v1249, 0
    %v1252 = vperm.slane %v1249, 2
    %v1253 = vperm.slane %v1249, 4
    %v1254 = vperm.slane %v1249, 6
    %v1259 = vperm.slane %v1251, 0
    %v1260 = vperm.slane %v1252, 0
    %v1261 = vperm.slane %v1253, 0
    %v1262 = vperm.slane %v1254, 0
    %v1263 = vmul.f32 %v1244, %v1259
    %v1264 = vmul.f32 %v1245, %v1260
    %v1265 = vmul.f32 %v1246, %v1261
    %v1266 = vmul.f32 %v1247, %v1262
    %v1267 = vadd.f32 %v1263, %v1264
    %v1268 = vadd.f32 %v1267, %v1265
    %v1269 = vadd.f32 %v1268, %v1266
    %1270 = vadd.xlane.f32.xlu0 %v1269
    %v1271 = vpop.xlane.xlu0 %1270
    %vm1272 = vcmask 7168
    %1273 = vst.msk [vmem:[%s6] sm:$0xff] %vm1272, %v1271
    %v1274 = vpack.c.bf16 %v262, %v262
    %v1275 = vpack.c.bf16 %v263, %v263
    %v1276 = vld [vmem:[#allocation7] sm:$0xff]
    %v1277 = vld [vmem:[#allocation7 + $0x8] sm:$0xff]
    %v1278 = vld [vmem:[#allocation7 + $0x10] sm:$0xff]
    %v1279 = vld [vmem:[#allocation7 + $0x18] sm:$0xff]
    %v1280 = vld [vmem:[#allocation7 + $0x20] sm:$0xff]
    %v1281 = vld [vmem:[#allocation7 + $0x28] sm:$0xff]
    %v1282 = vld [vmem:[#allocation7 + $0x30] sm:$0xff]
    %v1283 = vld [vmem:[#allocation7 + $0x38] sm:$0xff]
    %v1284 = vld [vmem:[#allocation7 + $0x40] sm:$0xff]
    %v1285 = vld [vmem:[#allocation7 + $0x48] sm:$0xff]
    %v1286 = vld [vmem:[#allocation7 + $0x50] sm:$0xff]
    %v1287 = vld [vmem:[#allocation7 + $0x58] sm:$0xff]
    %v1288 = vld [vmem:[#allocation7 + $0x60] sm:$0xff]
    %v1289 = vld [vmem:[#allocation7 + $0x68] sm:$0xff]
    %v1290 = vld [vmem:[#allocation7 + $0x70] sm:$0xff]
    %v1291 = vld [vmem:[#allocation7 + $0x78] sm:$0xff]
    %v1292 = vld [vmem:[#allocation7 + $0x80] sm:$0xff]
    %v1293 = vld [vmem:[#allocation7 + $0x88] sm:$0xff]
    %v1294 = vld [vmem:[#allocation7 + $0x90] sm:$0xff]
    %v1295 = vld [vmem:[#allocation7 + $0x98] sm:$0xff]
    %v1296 = vld [vmem:[#allocation7 + $0xa0] sm:$0xff]
    %v1297 = vld [vmem:[#allocation7 + $0xa8] sm:$0xff]
    %v1298 = vld [vmem:[#allocation7 + $0xb0] sm:$0xff]
    %v1299 = vld [vmem:[#allocation7 + $0xb8] sm:$0xff]
    %v1300 = vld [vmem:[#allocation7 + $0xc0] sm:$0xff]
    %v1301 = vld [vmem:[#allocation7 + $0xc8] sm:$0xff]
    %v1302 = vld [vmem:[#allocation7 + $0xd0] sm:$0xff]
    %v1303 = vld [vmem:[#allocation7 + $0xd8] sm:$0xff]
    %v1304 = vld [vmem:[#allocation7 + $0xe0] sm:$0xff]
    %v1305 = vld [vmem:[#allocation7 + $0xe8] sm:$0xff]
    %v1306 = vld [vmem:[#allocation7 + $0xf0] sm:$0xff]
    %v1307 = vld [vmem:[#allocation7 + $0xf8] sm:$0xff]
    %v1340 = vunpack.c.l.b16 %v1276
    %v1341 = vunpack.c.h.b16 %v1276
    %v1342 = vunpack.c.l.b16 %v1277
    %v1343 = vunpack.c.h.b16 %v1277
    %v1344 = vunpack.c.l.b16 %v1278
    %v1345 = vunpack.c.h.b16 %v1278
    %v1346 = vunpack.c.l.b16 %v1279
    %v1347 = vunpack.c.h.b16 %v1279
    %v1348 = vunpack.c.l.b16 %v1280
    %v1349 = vunpack.c.h.b16 %v1280
    %v1350 = vunpack.c.l.b16 %v1281
    %v1351 = vunpack.c.h.b16 %v1281
    %v1352 = vunpack.c.l.b16 %v1282
    %v1353 = vunpack.c.h.b16 %v1282
    %v1354 = vunpack.c.l.b16 %v1283
    %v1355 = vunpack.c.h.b16 %v1283
    %v1356 = vunpack.c.l.b16 %v1284
    %v1357 = vunpack.c.h.b16 %v1284
    %v1358 = vunpack.c.l.b16 %v1285
    %v1359 = vunpack.c.h.b16 %v1285
    %v1360 = vunpack.c.l.b16 %v1286
    %v1361 = vunpack.c.h.b16 %v1286
    %v1362 = vunpack.c.l.b16 %v1287
    %v1363 = vunpack.c.h.b16 %v1287
    %v1364 = vunpack.c.l.b16 %v1288
    %v1365 = vunpack.c.h.b16 %v1288
    %v1366 = vunpack.c.l.b16 %v1289
    %v1367 = vunpack.c.h.b16 %v1289
    %v1368 = vunpack.c.l.b16 %v1290
    %v1369 = vunpack.c.h.b16 %v1290
    %v1370 = vunpack.c.l.b16 %v1291
    %v1371 = vunpack.c.h.b16 %v1291
    %v1372 = vunpack.c.l.b16 %v1292
    %v1373 = vunpack.c.h.b16 %v1292
    %v1374 = vunpack.c.l.b16 %v1293
    %v1375 = vunpack.c.h.b16 %v1293
    %v1376 = vunpack.c.l.b16 %v1294
    %v1377 = vunpack.c.h.b16 %v1294
    %v1378 = vunpack.c.l.b16 %v1295
    %v1379 = vunpack.c.h.b16 %v1295
    %v1380 = vunpack.c.l.b16 %v1296
    %v1381 = vunpack.c.h.b16 %v1296
    %v1382 = vunpack.c.l.b16 %v1297
    %v1383 = vunpack.c.h.b16 %v1297
    %v1384 = vunpack.c.l.b16 %v1298
    %v1385 = vunpack.c.h.b16 %v1298
    %v1386 = vunpack.c.l.b16 %v1299
    %v1387 = vunpack.c.h.b16 %v1299
    %v1388 = vunpack.c.l.b16 %v1300
    %v1389 = vunpack.c.h.b16 %v1300
    %v1390 = vunpack.c.l.b16 %v1301
    %v1391 = vunpack.c.h.b16 %v1301
    %v1392 = vunpack.c.l.b16 %v1302
    %v1393 = vunpack.c.h.b16 %v1302
    %v1394 = vunpack.c.l.b16 %v1303
    %v1395 = vunpack.c.h.b16 %v1303
    %v1396 = vunpack.c.l.b16 %v1304
    %v1397 = vunpack.c.h.b16 %v1304
    %v1398 = vunpack.c.l.b16 %v1305
    %v1399 = vunpack.c.h.b16 %v1305
    %v1400 = vunpack.c.l.b16 %v1306
    %v1401 = vunpack.c.h.b16 %v1306
    %v1402 = vunpack.c.l.b16 %v1307
    %v1403 = vunpack.c.h.b16 %v1307
    %v1404 = vpack.c.b16 %v1342, %v1340
    %v1405 = vpack.c.b16 %v1343, %v1341
    %v1406 = vpack.c.b16 %v1346, %v1344
    %v1407 = vpack.c.b16 %v1347, %v1345
    %v1408 = vpack.c.b16 %v1350, %v1348
    %v1409 = vpack.c.b16 %v1351, %v1349
    %v1410 = vpack.c.b16 %v1354, %v1352
    %v1411 = vpack.c.b16 %v1355, %v1353
    %v1412 = vpack.c.b16 %v1358, %v1356
    %v1413 = vpack.c.b16 %v1359, %v1357
    %v1414 = vpack.c.b16 %v1362, %v1360
    %v1415 = vpack.c.b16 %v1363, %v1361
    %v1416 = vpack.c.b16 %v1366, %v1364
    %v1417 = vpack.c.b16 %v1367, %v1365
    %v1418 = vpack.c.b16 %v1370, %v1368
    %v1419 = vpack.c.b16 %v1371, %v1369
    %v1420 = vpack.c.b16 %v1374, %v1372
    %v1421 = vpack.c.b16 %v1375, %v1373
    %v1422 = vpack.c.b16 %v1378, %v1376
    %v1423 = vpack.c.b16 %v1379, %v1377
    %v1424 = vpack.c.b16 %v1382, %v1380
    %v1425 = vpack.c.b16 %v1383, %v1381
    %v1426 = vpack.c.b16 %v1386, %v1384
    %v1427 = vpack.c.b16 %v1387, %v1385
    %v1428 = vpack.c.b16 %v1390, %v1388
    %v1429 = vpack.c.b16 %v1391, %v1389
    %v1430 = vpack.c.b16 %v1394, %v1392
    %v1431 = vpack.c.b16 %v1395, %v1393
    %v1432 = vpack.c.b16 %v1398, %v1396
    %v1433 = vpack.c.b16 %v1399, %v1397
    %v1434 = vpack.c.b16 %v1402, %v1400
    %v1435 = vpack.c.b16 %v1403, %v1401
    %1468 = vmatpush.bf16.msra.mxu0 %v1418
    %1469 = vmatpush.bf16.msra.mxu0 %v1416
    %1470 = vmatpush.bf16.msra.mxu0 %v1414
    %1471 = vmatpush.bf16.msra.mxu0 %v1412
    %1472 = vmatpush.bf16.msra.mxu0 %v1410
    %1473 = vmatpush.bf16.msra.mxu0 %v1408
    %1474 = vmatpush.bf16.msra.mxu0 %v1406
    %1475 = vmatpush.bf16.msra.mxu0 %v1404
    %1476 = vmatmul.bf16.gmra.mxu0 %v1274
    %v1477 = vpop.f32.mrf.mxu0
    %v1478 = vadd.f32 0.0, %v1477
    %v1479 = vpop.f32.mrf.mxu0
    %1480 = vdwg.mxu0
    %1481 = vmatpush.bf16.msra.mxu0 %v1434
    %1482 = vmatpush.bf16.msra.mxu0 %v1432
    %1483 = vmatpush.bf16.msra.mxu0 %v1430
    %1484 = vmatpush.bf16.msra.mxu0 %v1428
    %1485 = vmatpush.bf16.msra.mxu0 %v1426
    %1486 = vmatpush.bf16.msra.mxu0 %v1424
    %1487 = vmatpush.bf16.msra.mxu0 %v1422
    %1488 = vmatpush.bf16.msra.mxu0 %v1420
    %1489 = vmatmul.bf16.gmra.mxu0 %v1275
    %v1490 = vpop.f32.mrf.mxu0
    %v1491 = vadd.f32 %v1478, %v1490
    %v1492 = vpop.f32.mrf.mxu0
    %1493 = vdwg.mxu0
    %1494 = vmatpush.bf16.msra.mxu0 %v1419
    %1495 = vmatpush.bf16.msra.mxu0 %v1417
    %1496 = vmatpush.bf16.msra.mxu0 %v1415
    %1497 = vmatpush.bf16.msra.mxu0 %v1413
    %1498 = vmatpush.bf16.msra.mxu0 %v1411
    %1499 = vmatpush.bf16.msra.mxu0 %v1409
    %1500 = vmatpush.bf16.msra.mxu0 %v1407
    %1501 = vmatpush.bf16.msra.mxu0 %v1405
    %1502 = vmatmul.bf16.gmra.mxu0 %v1274
    %v1503 = vpop.f32.mrf.mxu0
    %v1504 = vadd.f32 0.0, %v1503
    %v1505 = vpop.f32.mrf.mxu0
    %1506 = vdwg.mxu0
    %1507 = vmatpush.bf16.msra.mxu0 %v1435
    %1508 = vmatpush.bf16.msra.mxu0 %v1433
    %1509 = vmatpush.bf16.msra.mxu0 %v1431
    %1510 = vmatpush.bf16.msra.mxu0 %v1429
    %1511 = vmatpush.bf16.msra.mxu0 %v1427
    %1512 = vmatpush.bf16.msra.mxu0 %v1425
    %1513 = vmatpush.bf16.msra.mxu0 %v1423
    %1514 = vmatpush.bf16.msra.mxu0 %v1421
    %1515 = vmatmul.bf16.gmra.mxu0 %v1275
    %v1516 = vpop.f32.mrf.mxu0
    %v1517 = vadd.f32 %v1504, %v1516
    %v1518 = vpop.f32.mrf.mxu0
    %1519 = vdwg.mxu0
    %v1520 = vmax.f32 %v1491, 0.0
    %v1521 = vmax.f32 %v1517, 0.0
    %v1522 = vpack.c.bf16 %v1520, %v1520
    %v1523 = vpack.c.bf16 %v1521, %v1521
    %v1524 = vld [vmem:[#allocation9] sm:$0xf]
    %v1525 = vld [vmem:[#allocation9 + $0x4] sm:$0xf]
    %v1526 = vld [vmem:[#allocation9 + $0x8] sm:$0xf]
    %v1527 = vld [vmem:[#allocation9 + $0xc] sm:$0xf]
    %v1528 = vld [vmem:[#allocation9 + $0x10] sm:$0xf]
    %v1529 = vld [vmem:[#allocation9 + $0x14] sm:$0xf]
    %v1530 = vld [vmem:[#allocation9 + $0x18] sm:$0xf]
    %v1531 = vld [vmem:[#allocation9 + $0x1c] sm:$0xf]
    %v1532 = vld [vmem:[#allocation9 + $0x20] sm:$0xf]
    %v1533 = vld [vmem:[#allocation9 + $0x24] sm:$0xf]
    %v1534 = vld [vmem:[#allocation9 + $0x28] sm:$0xf]
    %v1535 = vld [vmem:[#allocation9 + $0x2c] sm:$0xf]
    %v1536 = vld [vmem:[#allocation9 + $0x30] sm:$0xf]
    %v1537 = vld [vmem:[#allocation9 + $0x34] sm:$0xf]
    %v1538 = vld [vmem:[#allocation9 + $0x38] sm:$0xf]
    %v1539 = vld [vmem:[#allocation9 + $0x3c] sm:$0xf]
    %v1540 = vld [vmem:[#allocation9 + $0x40] sm:$0xf]
    %v1541 = vld [vmem:[#allocation9 + $0x44] sm:$0xf]
    %v1542 = vld [vmem:[#allocation9 + $0x48] sm:$0xf]
    %v1543 = vld [vmem:[#allocation9 + $0x4c] sm:$0xf]
    %v1544 = vld [vmem:[#allocation9 + $0x50] sm:$0xf]
    %v1545 = vld [vmem:[#allocation9 + $0x54] sm:$0xf]
    %v1546 = vld [vmem:[#allocation9 + $0x58] sm:$0xf]
    %v1547 = vld [vmem:[#allocation9 + $0x5c] sm:$0xf]
    %v1548 = vld [vmem:[#allocation9 + $0x60] sm:$0xf]
    %v1549 = vld [vmem:[#allocation9 + $0x64] sm:$0xf]
    %v1550 = vld [vmem:[#allocation9 + $0x68] sm:$0xf]
    %v1551 = vld [vmem:[#allocation9 + $0x6c] sm:$0xf]
    %v1552 = vld [vmem:[#allocation9 + $0x70] sm:$0xf]
    %v1553 = vld [vmem:[#allocation9 + $0x74] sm:$0xf]
    %v1554 = vld [vmem:[#allocation9 + $0x78] sm:$0xf]
    %v1555 = vld [vmem:[#allocation9 + $0x7c] sm:$0xf]
    %v1588 = vunpack.c.l.b16 %v1524
    %v1589 = vunpack.c.l.b16 %v1525
    %v1590 = vunpack.c.l.b16 %v1526
    %v1591 = vunpack.c.l.b16 %v1527
    %v1592 = vunpack.c.l.b16 %v1528
    %v1593 = vunpack.c.l.b16 %v1529
    %v1594 = vunpack.c.l.b16 %v1530
    %v1595 = vunpack.c.l.b16 %v1531
    %v1596 = vunpack.c.l.b16 %v1532
    %v1597 = vunpack.c.l.b16 %v1533
    %v1598 = vunpack.c.l.b16 %v1534
    %v1599 = vunpack.c.l.b16 %v1535
    %v1600 = vunpack.c.l.b16 %v1536
    %v1601 = vunpack.c.l.b16 %v1537
    %v1602 = vunpack.c.l.b16 %v1538
    %v1603 = vunpack.c.l.b16 %v1539
    %v1604 = vunpack.c.l.b16 %v1540
    %v1605 = vunpack.c.l.b16 %v1541
    %v1606 = vunpack.c.l.b16 %v1542
    %v1607 = vunpack.c.l.b16 %v1543
    %v1608 = vunpack.c.l.b16 %v1544
    %v1609 = vunpack.c.l.b16 %v1545
    %v1610 = vunpack.c.l.b16 %v1546
    %v1611 = vunpack.c.l.b16 %v1547
    %v1612 = vunpack.c.l.b16 %v1548
    %v1613 = vunpack.c.l.b16 %v1549
    %v1614 = vunpack.c.l.b16 %v1550
    %v1615 = vunpack.c.l.b16 %v1551
    %v1616 = vunpack.c.l.b16 %v1552
    %v1617 = vunpack.c.l.b16 %v1553
    %v1618 = vunpack.c.l.b16 %v1554
    %v1619 = vunpack.c.l.b16 %v1555
    %v1620 = vpack.c.b16 %v1589, %v1588
    %v1621 = vpack.c.b16 %v1591, %v1590
    %v1622 = vpack.c.b16 %v1593, %v1592
    %v1623 = vpack.c.b16 %v1595, %v1594
    %v1624 = vpack.c.b16 %v1597, %v1596
    %v1625 = vpack.c.b16 %v1599, %v1598
    %v1626 = vpack.c.b16 %v1601, %v1600
    %v1627 = vpack.c.b16 %v1603, %v1602
    %v1628 = vpack.c.b16 %v1605, %v1604
    %v1629 = vpack.c.b16 %v1607, %v1606
    %v1630 = vpack.c.b16 %v1609, %v1608
    %v1631 = vpack.c.b16 %v1611, %v1610
    %v1632 = vpack.c.b16 %v1613, %v1612
    %v1633 = vpack.c.b16 %v1615, %v1614
    %v1634 = vpack.c.b16 %v1617, %v1616
    %v1635 = vpack.c.b16 %v1619, %v1618
    %1652 = vmatpush.bf16.msra.mxu0 %v1627
    %1653 = vmatpush.bf16.msra.mxu0 %v1626
    %1654 = vmatpush.bf16.msra.mxu0 %v1625
    %1655 = vmatpush.bf16.msra.mxu0 %v1624
    %1656 = vmatpush.bf16.msra.mxu0 %v1623
    %1657 = vmatpush.bf16.msra.mxu0 %v1622
    %1658 = vmatpush.bf16.msra.mxu0 %v1621
    %1659 = vmatpush.bf16.msra.mxu0 %v1620
    %1660 = vmatmul.bf16.gmra.mxu0 %v1522
    %v1661 = vpop.f32.mrf.mxu0
    %v1662 = vadd.f32 0.0, %v1661
    %v1663 = vpop.f32.mrf.mxu0
    %1664 = vdwg.mxu0
    %1665 = vmatpush.bf16.msra.mxu0 %v1635
    %1666 = vmatpush.bf16.msra.mxu0 %v1634
    %1667 = vmatpush.bf16.msra.mxu0 %v1633
    %1668 = vmatpush.bf16.msra.mxu0 %v1632
    %1669 = vmatpush.bf16.msra.mxu0 %v1631
    %1670 = vmatpush.bf16.msra.mxu0 %v1630
    %1671 = vmatpush.bf16.msra.mxu0 %v1629
    %1672 = vmatpush.bf16.msra.mxu0 %v1628
    %1673 = vmatmul.bf16.gmra.mxu0 %v1523
    %v1674 = vpop.f32.mrf.mxu0
    %v1675 = vadd.f32 %v1662, %v1674
    %v1676 = vpop.f32.mrf.mxu0
    %1677 = vdwg.mxu0
    %v1678 = vtanh.pop %v1675
    %1679 = vst [vmem:[%s7] sm:$0xff] %v1678
    // Predicated region
    $region46: #{the_network_forward.1} parent=1 // pred_check
      _
    $region47: #{the_network_forward.1} parent=1 // pred_check_branch
      %1681 = sbr.rel (0) target = $region49
    $region48: #{the_network_forward.1} parent=1 // pred_region
      _
    $region49: #{the_network_forward.1} parent=1 // pred_fallthru
      _
    // Predicated region
    $region50: #{the_network_forward.1} parent=1 // pred_check
      _
    $region51: #{the_network_forward.1} parent=1 // pred_check_branch
      %1683 = sbr.rel (0) target = $region53
    $region52: #{the_network_forward.1} parent=1 // pred_region
      _
    $region53: #{the_network_forward.1} parent=1 // pred_fallthru
      _
    // Predicated region
    $region54: #{the_network_forward.1} parent=1 // pred_check
      _
    $region55: #{the_network_forward.1} parent=1 // pred_check_branch
      %1685 = sbr.rel (0) target = $region57
    $region56: #{the_network_forward.1} parent=1 // pred_region
      _
    $region57: #{the_network_forward.1} parent=1 // pred_fallthru
      _
    // Predicated region
    $region58: #{the_network_forward.1} parent=1 // pred_check
      _
    $region59: #{the_network_forward.1} parent=1 // pred_check_branch
      %1687 = sbr.rel (0) target = $region61
    $region60: #{the_network_forward.1} parent=1 // pred_region
      _
    $region61: #{the_network_forward.1} parent=1 // pred_fallthru
      _
    %1688 = vsyncpa [#allocation3], 1
    %1689 = vsyncpa [#allocation5], 1
    %1690 = vsyncpa [#allocation8], 1

</llo_original>
